<compile_context>
chip_gen: v7x
topology: tpu7x:2x2x1
jax: 0.10.0
libtpu: 0.0.40
codegen_flags: <defaults>
</compile_context>

<pallas_src>
import math

import jax
import jax.numpy as jnp
from jax.experimental import pallas as pl
from jax.experimental.pallas import tpu as pltpu


def _patch_embed_kernel(x_ref, w_ref, b_ref, o_ref):
    # x_ref: (tm, x_lane)  w_ref: (w_rows, n_block)  b_ref: (1, n_block)
    acc = jnp.dot(x_ref[...], w_ref[...], preferred_element_type=jnp.float32)
    o_ref[...] = (acc + b_ref[...]).astype(o_ref.dtype)


def _round_up(a, b):
    return ((a + b - 1) // b) * b


def _tpu_budget():
    """Returns (scoped VMEM budget in bytes, # TensorCores to feed)."""
    phys = 128 * 1024 * 1024
    try:
        info = pltpu.get_tpu_info()
        phys = int(getattr(info, "vmem_capacity_bytes", phys))
    except Exception:
        pass
    if phys <= 64 * 1024 * 1024:      # v7x-class: half the VMEM, 2 TCs/chip
        return 48 * 1024 * 1024, 2
    return 64 * 1024 * 1024, 1        # v5e / v6e: 128 MiB physical, 1 TC


def _choose_fold(num_patches, embed_dim, lane_target=256):
    """Smallest patch-fold q with q*E a multiple of 128 and >= lane_target."""
    step = 128 // math.gcd(embed_dim, 128)
    q = step
    while q * embed_dim < lane_target and q < num_patches:
        q += step
    if q >= num_patches:
        q = num_patches               # small config: fold everything
    return q


def build_patch_projection(weight, bias, *, num_patches, patch_size,
                           feature_size):
    """Pack nn.Linear(patch_size, E) into a block-diagonal lane-folded weight.

    Returns (w_blk, b_blk, q, n_groups).  Compute once per set of weights and
    reuse across calls to hoist the packing out of the per-call path.
    """
    embed_dim = weight.shape[0]
    G, P = num_patches, patch_size
    q = _choose_fold(G, embed_dim)
    n_groups = pl.cdiv(G, q)
    wt = weight.T                                              # (P, E)
    if n_groups == 1:
        # Fold all patches; dropping the trailing zero-pad rows absorbs F.pad
        # for free (the unpadded x feeds the matmul directly).
        w_blk = jnp.kron(jnp.eye(G, dtype=weight.dtype), wt)[:feature_size]
        b_blk = jnp.tile(bias, (G,)).reshape(1, G * embed_dim)
    else:
        w_blk = jnp.kron(jnp.eye(q, dtype=weight.dtype), wt)   # (q*P, q*E)
        b_blk = jnp.tile(bias, (q,)).reshape(1, q * embed_dim)
    return w_blk, b_blk, q, n_groups


def _pick_tile_m(B, x_lane, w_rows, n_block, budget, cores, n_groups):
    """Largest row tile fitting the VMEM budget; shard rows across cores."""
    x_lane_p = _round_up(x_lane, 128)       # x tile is lane-padded to 128
    n_blk_p = _round_up(n_block, 128)
    # Residents (weight + bias), charged at the default 2 buffers each.
    resident = 4 * 2 * (_round_up(w_rows, 8) * n_blk_p + 8 * n_blk_p)
    # Per output row: up-to-3-deep x buffering + 2-deep output buffering.
    per_row = 4 * (3 * x_lane_p + 2 * n_blk_p)
    avail = int(budget * 0.85) - resident
    tm_cap = max(8, (avail // per_row) // 8 * 8) if avail > 0 else 8
    if B < 8:
        return B                            # full-dim row block (always legal)
    tm = min(tm_cap, 1024, (B // 8) * 8)
    if cores > 1 and B >= 16:
        if pl.cdiv(B, tm) * n_groups < cores:   # would leave a TensorCore idle
            tm = min(tm, _round_up(pl.cdiv(B, cores), 8), (B // 8) * 8)
    return max(8, tm)


def patch_embeddings(x, weight, bias, *, num_patches, patch_size, pad_size,
                     packed=None):
    """x: (B, feature_size) f32; weight: (E, patch_size); bias: (E,).
    Returns (B, num_patches, E).  Pass packed=build_patch_projection(...) to
    reuse the packed projection across calls."""
    B, feature_size = x.shape
    embed_dim = weight.shape[0]
    G, P = num_patches, patch_size
    assert G * P - feature_size == pad_size

    if packed is None:
        packed = build_patch_projection(weight, bias, num_patches=G,
                                        patch_size=P, feature_size=feature_size)
    w_blk, b_blk, q, n_groups = packed
    n_block = q * embed_dim
    w_rows = w_blk.shape[0]
    budget, cores = _tpu_budget()

    if n_groups == 1:
        x_in, x_lane = x, feature_size
    else:
        # Pad to a whole number of patch groups and put the group axis leading
        # so every x block spans the full (lane-dense) last dim -> legal tiles.
        gp = n_groups * q
        x_pad = jnp.pad(x, ((0, 0), (0, gp * P - feature_size)))
        x_in = x_pad.reshape(B, n_groups, q * P).transpose(1, 0, 2)
        x_lane = q * P

    tm = _pick_tile_m(B, x_lane, w_rows, n_block, budget, cores, n_groups)
    row_tiles = pl.cdiv(B, tm)
    grid = (row_tiles, n_groups)

    # 3-deep buffering on the streaming x input only (never the output), and
    # only once the pipeline is long enough to benefit.
    x_extra = ({"pipeline_mode": pl.Buffered(3)}
               if (row_tiles > 2 and hasattr(pl, "Buffered")) else {})
    if n_groups == 1:
        x_spec = pl.BlockSpec((tm, feature_size), lambda i, g: (i, 0), **x_extra)
    else:
        x_spec = pl.BlockSpec((None, tm, x_lane),          # leading dim squeezed
                              lambda i, g: (g, i, 0), **x_extra)

    in_specs = [
        x_spec,
        pl.BlockSpec((w_rows, n_block), lambda i, g: (0, 0)),   # resident weight
        pl.BlockSpec((1, n_block), lambda i, g: (0, 0)),        # resident bias
    ]
    out_width = n_groups * n_block
    out_spec = pl.BlockSpec((tm, n_block), lambda i, g: (i, g))

    cost = pl.CostEstimate(
        flops=2 * B * w_rows * n_block * n_groups,
        transcendentals=0,
        bytes_accessed=4 * (B * x_lane * n_groups + w_rows * n_block
                            + n_block + B * out_width),
    )

    out2d = pl.pallas_call(
        _patch_embed_kernel,
        out_shape=jax.ShapeDtypeStruct((B, out_width), x.dtype),
        grid_spec=pl.GridSpec(grid=grid, in_specs=in_specs, out_specs=out_spec),
        compiler_params=pltpu.CompilerParams(
            dimension_semantics=("parallel", "parallel"),
            vmem_limit_bytes=budget,
        ),
        cost_estimate=cost,
    )(x_in, w_blk, b_blk)

    if out_width != G * embed_dim:          # padded patch groups -> trim
        out2d = out2d[:, :G * embed_dim]
    # Row-major (B, G*E) is byte-identical to (B, G, E): free reshape.
    return out2d.reshape(B, G, embed_dim)


if __name__ == "__main__":
    def ref_patch_embed(x, weight, bias, num_patches, patch_size, pad_size):
        B = x.shape[0]
        x_pad = jnp.pad(x, ((0, 0), (0, pad_size)))
        x_pad = x_pad.reshape(B, num_patches, patch_size)
        return jnp.einsum("bnp,ep->bne", x_pad, weight) + bias

    key = jax.random.PRNGKey(0)

    # Config 1: module-default small shapes (single weight block, n_groups=1).
    feature_size, num_patches, hidden_size, batch = 30, 8, 32, 2
    patch_size = math.ceil(feature_size / num_patches)        # 4
    pad_size = num_patches * patch_size - feature_size        # 2
    k_x, k_w, k_b, key = jax.random.split(key, 4)
    bound = 1.0 / math.sqrt(patch_size)
    weight = jax.random.uniform(k_w, (hidden_size, patch_size),
                                minval=-bound, maxval=bound, dtype=jnp.float32)
    bias = jax.random.uniform(k_b, (hidden_size,),
                              minval=-bound, maxval=bound, dtype=jnp.float32)
    x = jax.random.normal(k_x, (batch, feature_size), dtype=jnp.float32)
    out = jax.block_until_ready(
        patch_embeddings(x, weight, bias, num_patches=num_patches,
                         patch_size=patch_size, pad_size=pad_size))
    ref = ref_patch_embed(x, weight, bias, num_patches, patch_size, pad_size)
    assert out.shape == (batch, num_patches, hidden_size)
    assert jnp.allclose(out, ref, atol=1e-5, rtol=1e-5)

    # Config 2: exercises the grouped 2-axis-grid path (24 patches -> 3 groups
    # of 8, q*E = 256 = one v6e/v7x MXU N tile), batch 16.
    feature_size, num_patches, hidden_size, batch = 100, 24, 32, 16
    patch_size = math.ceil(feature_size / num_patches)        # 5
    pad_size = num_patches * patch_size - feature_size        # 20
    k_x, k_w, k_b, key = jax.random.split(key, 4)
    bound = 1.0 / math.sqrt(patch_size)
    weight = jax.random.uniform(k_w, (hidden_size, patch_size),
                                minval=-bound, maxval=bound, dtype=jnp.float32)
    bias = jax.random.uniform(k_b, (hidden_size,),
                              minval=-bound, maxval=bound, dtype=jnp.float32)
    x = jax.random.normal(k_x, (batch, feature_size), dtype=jnp.float32)
    out = jax.block_until_ready(
        patch_embeddings(x, weight, bias, num_patches=num_patches,
                         patch_size=patch_size, pad_size=pad_size))
    ref = ref_patch_embed(x, weight, bias, num_patches, patch_size, pad_size)
    assert out.shape == (batch, num_patches, hidden_size)
    assert jnp.allclose(out, ref, atol=1e-5, rtol=1e-5)

    print("KERNEL_OK")
</pallas_src>

<mosaic_0001>
module attributes {stable_mosaic.version = 11 : i64} {
  func.func @_patch_embed_kernel(%arg0: i32, %arg1: i32, %arg2: memref<2x30xf32, #tpu.memory_space<vmem>>, %arg3: memref<30x256xf32, #tpu.memory_space<vmem>>, %arg4: memref<1x256xf32, #tpu.memory_space<vmem>>, %arg5: memref<2x256xf32, #tpu.memory_space<vmem>>) attributes {dimension_semantics = [#tpu.dimension_semantics<parallel>, #tpu.dimension_semantics<parallel>], iteration_bounds = array<i64: 1, 1>, scalar_prefetch = 0 : i64, scratch_operands = 0 : i64, tpu.core_type = #tpu.core_type<tc>, window_params = [{transform_indices = @transform_0, window_bounds = array<i64: 2, 30>}, {pipeline_mode = #tpu.pipeline_mode<synchronous>, transform_indices = @transform_1, window_bounds = array<i64: 30, 256>}, {pipeline_mode = #tpu.pipeline_mode<synchronous>, transform_indices = @transform_2, window_bounds = array<i64: 1, 256>}, {transform_indices = @transform_3, window_bounds = array<i64: 2, 256>}]} {
    %c0 = arith.constant 0 : index
    %c0_0 = arith.constant 0 : index
    %0 = vector.load %arg2[%c0, %c0_0] : memref<2x30xf32, #tpu.memory_space<vmem>>, vector<2x30xf32>
    %c0_1 = arith.constant 0 : index
    %c0_2 = arith.constant 0 : index
    %1 = vector.load %arg3[%c0_1, %c0_2] : memref<30x256xf32, #tpu.memory_space<vmem>>, vector<30x256xf32>
    %cst = arith.constant dense<0.000000e+00> : vector<2x256xf32>
    %2 = tpu.matmul %0, %1, %cst {dimension_numbers = #tpu.dot_dimension_numbers<[1], [0], [0], [1], [0, 0, 1, 1], [], []>} : vector<2x30xf32>, vector<30x256xf32>, vector<2x256xf32> -> vector<2x256xf32>
    %c0_3 = arith.constant 0 : index
    %c0_4 = arith.constant 0 : index
    %3 = vector.load %arg4[%c0_3, %c0_4] : memref<1x256xf32, #tpu.memory_space<vmem>>, vector<1x256xf32>
    %4 = vector.broadcast %3 : vector<1x256xf32> to vector<2x256xf32>
    %5 = arith.addf %2, %4 : vector<2x256xf32>
    %c0_5 = arith.constant 0 : index
    %c0_6 = arith.constant 0 : index
    %6 = vector.load %arg5[%c0_5, %c0_6] : memref<2x256xf32, #tpu.memory_space<vmem>>, vector<2x256xf32>
    tpu.vector_store %arg5[%c0_5, %c0_6], %5 {strides = array<i32>} : memref<2x256xf32, #tpu.memory_space<vmem>>, vector<2x256xf32>,
    return
  }
  func.func @transform_0(%arg0: i32, %arg1: i32) -> (i32, i32) {
    %c0_i32 = arith.constant 0 : i32
    %c0_i32_0 = arith.constant 0 : i32
    return %arg0, %c0_i32 : i32, i32
  }
  func.func @transform_1(%arg0: i32, %arg1: i32) -> (i32, i32) {
    %c0_i32 = arith.constant 0 : i32
    %c0_i32_0 = arith.constant 0 : i32
    %c0_i32_1 = arith.constant 0 : i32
    return %c0_i32, %c0_i32_0 : i32, i32
  }
  func.func @transform_2(%arg0: i32, %arg1: i32) -> (i32, i32) {
    %c0_i32 = arith.constant 0 : i32
    %c0_i32_0 = arith.constant 0 : i32
    %c0_i32_1 = arith.constant 0 : i32
    return %c0_i32, %c0_i32_0 : i32, i32
  }
  func.func @transform_3(%arg0: i32, %arg1: i32) -> (i32, i32) {
    %c0_i32 = arith.constant 0 : i32
    return %arg0, %arg1 : i32, i32
  }
}

</mosaic_0001>

<llo_original>
// kernel: tpu_custom_call.1
$region0: #{tpu_custom_call.1}
  #allocation0 [shape = 'u32[]', space=smem, size = 0x4, offset = 0x4, fixed_abs, tag = 'smem constant byte address 0x4 - core index']
  #allocation1 [shape = 'u32[144,128]{1,0:T(1,128)}', space=vmem, size = 0x12000, scoped, tag = 'internal scratch']
  %s0 = inlined_call_operand.hbm [shape: f32[2,30], index: 0, kind: input, shape index: {}]
  %s1 = inlined_call_operand.hbm [shape: f32[30,256], index: 1, kind: input, shape index: {}]
  %s2 = inlined_call_operand.hbm [shape: f32[1,256], index: 2, kind: input, shape index: {}]
  %s3 = inlined_call_operand.hbm [shape: f32[2,256], index: 3, kind: output, shape index: {}]
  %s4 = sld [smem:[#allocation0]]
  $region34: #{tpu_custom_call.1} parent=0
    _
  %s6 = ssub.s32 1, %s4
  %s7 = scalar_select 0, %s6, %s4
  $region1: #{tpu_custom_call.1} parent=0
    #allocation2 [shape = 'u8[1024]{0}', space=vmem, size = 0x400, scoped, tag = 'input window, operand 0, single buffered']
    #allocation3 [shape = 's32[1]{0}', space=sflag, size = 0x4, scoped, tag = 'scoped memory for tpu_custom_call.1']
    #allocation4 [shape = 's32[1]{0}', space=sflag, size = 0x4, scoped, tag = 'scoped memory for tpu_custom_call.1']
    #allocation5 [shape = 'u8[32768]{0}', space=vmem, size = 0x8000, scoped, tag = 'input window, operand 1, single buffered']
    #allocation6 [shape = 's32[1]{0}', space=sflag, size = 0x4, scoped, tag = 'scoped memory for tpu_custom_call.1']
    #allocation7 [shape = 'u8[1024]{0}', space=vmem, size = 0x400, scoped, tag = 'input window, operand 2, single buffered']
    #allocation8 [shape = 'u8[2048]{0}', space=vmem, size = 0x800, scoped, tag = 'output window, operand 0, single buffered']
    %8 = vsyncpa [#allocation3], 0
    %9 = vsyncpa [#allocation6], 0
    %10 = vsyncpa [#allocation4], 0
    // Predicated region
    $region2: #{tpu_custom_call.1} parent=1 // pred_check
      _
    $region3: #{tpu_custom_call.1} parent=1 // pred_check_branch
      %12 = sbr.rel (0) target = $region5
    $region4: #{tpu_custom_call.1} parent=1 // pred_region
      %s14 = ssub.s32 32, 32
      %15 = vsyncadd [#allocation3], %s14
      %s17 = sshll.u32 [#allocation2], 4
      %s18 = int_to_ptr.vmem [resolvable:$true] %s17
      %20 = dma.hbm_to_vmem [thread:$0]  %s0, 32, %s18, [#allocation3]
    $region5: #{tpu_custom_call.1} parent=1 // pred_fallthru
      _
    // Predicated region
    $region6: #{tpu_custom_call.1} parent=1 // pred_check
      _
    $region7: #{tpu_custom_call.1} parent=1 // pred_check_branch
      %22 = sbr.rel (0) target = $region9
    $region8: #{tpu_custom_call.1} parent=1 // pred_region
      %s24 = ssub.s32 1024, 1024
      %25 = vsyncadd [#allocation6], %s24
      %s26 = sshll.u32 [#allocation5], 4
      %s27 = int_to_ptr.vmem [resolvable:$true] %s26
      %32 = dma.hbm_to_vmem [thread:$0]  %s1, 1024, %s27, [#allocation6], 256, 256, 16
    $region9: #{tpu_custom_call.1} parent=1 // pred_fallthru
      _
    // Predicated region
    $region10: #{tpu_custom_call.1} parent=1 // pred_check
      _
    $region11: #{tpu_custom_call.1} parent=1 // pred_check_branch
      %34 = sbr.rel (0) target = $region13
    $region12: #{tpu_custom_call.1} parent=1 // pred_region
      %s36 = ssub.s32 32, 32
      %37 = vsyncadd [#allocation6], %s36
      %s39 = sshll.u32 [#allocation7], 4
      %s40 = int_to_ptr.vmem [resolvable:$true] %s39
      %42 = dma.hbm_to_vmem [thread:$0]  %s2, 32, %s40, [#allocation6]
    $region13: #{tpu_custom_call.1} parent=1 // pred_fallthru
      _
    // Predicated region
    $region14: #{tpu_custom_call.1} parent=1 // pred_check
      _
    $region15: #{tpu_custom_call.1} parent=1 // pred_check_branch
      %44 = sbr.rel (0) target = $region17
    $region16: #{tpu_custom_call.1} parent=1 // pred_region
      %45 = dma.done [#allocation3], 32
    $region17: #{tpu_custom_call.1} parent=1 // pred_fallthru
      _
    // Predicated region
    $region18: #{tpu_custom_call.1} parent=1 // pred_check
      _
    $region19: #{tpu_custom_call.1} parent=1 // pred_check_branch
      %47 = sbr.rel (0) target = $region21
    $region20: #{tpu_custom_call.1} parent=1 // pred_region
      %48 = dma.done [#allocation6], 1024
    $region21: #{tpu_custom_call.1} parent=1 // pred_fallthru
      _
    // Predicated region
    $region22: #{tpu_custom_call.1} parent=1 // pred_check
      _
    $region23: #{tpu_custom_call.1} parent=1 // pred_check_branch
      %50 = sbr.rel (0) target = $region25
    $region24: #{tpu_custom_call.1} parent=1 // pred_region
      %51 = dma.done [#allocation6], 32
    $region25: #{tpu_custom_call.1} parent=1 // pred_fallthru
      _
    %v52 = vld [vmem:[#allocation2] sm:$0x3]
    %v53 = vld [vmem:[#allocation5] sm:$0xff]
    %v54 = vld [vmem:[#allocation5 + $0x8] sm:$0xff]
    %v55 = vld [vmem:[#allocation5 + $0x10] sm:$0xff]
    %v56 = vld [vmem:[#allocation5 + $0x18] sm:$0xff]
    %v57 = vld [vmem:[#allocation5 + $0x20] sm:$0xff]
    %v58 = vld [vmem:[#allocation5 + $0x28] sm:$0xff]
    %v59 = vld [vmem:[#allocation5 + $0x30] sm:$0x3f]
    %v60 = vld [vmem:[#allocation5 + $0x38] sm:$0x3f]
    %v61 = vld [vmem:[#allocation7] sm:$0x3]
    %v63 = vlaneseq
    %v64 = vshrl.u32 %v63, 7
    %v65 = vsub.s32 0, %v64
    %v66 = vrot.slane %v61, %v65
    %v67 = vlaneseq
    %v68 = vshrl.u32 %v67, 7
    %v69 = vsub.s32 1, %v68
    %v70 = vrot.slane %v61, %v69
    %vm73 = vcmask 244736
    %v75 = vsel %vm73, %v52, 0
    %vm77 = vcmask 1045504
    %v79 = vsel %vm77, %v59, 0
    %v82 = vsel %vm77, %v60, 0
    %84 = vmatprep.subr.mxu0 %v54
    %85 = vmatpush1.msra.mxu0 %v53
    %86 = vmatprep.subr.mxu0 %v56
    %87 = vmatpush1.msra.mxu0 %v55
    %88 = vmatprep.subr.mxu0 %v58
    %89 = vmatpush1.msra.mxu0 %v57
    %90 = vmatprep.subr.mxu0 %v82
    %91 = vmatpush1.msra.mxu0 %v79
    %92 = vmatprep.subr.mxu0 0.0
    %93 = vmatpush1.msra.mxu0 0.0
    %94 = vmatprep.subr.mxu0 0.0
    %95 = vmatpush1.msra.mxu0 0.0
    %96 = vmatprep.subr.mxu0 0.0
    %97 = vmatpush1.msra.mxu0 0.0
    %98 = vmatprep.subr.mxu0 0.0
    %99 = vmatpush1.msra.mxu0 0.0
    %100 = vmatprep.subr.mxu0 0.0
    %101 = vmatpush1.msra.mxu0 0.0
    %102 = vmatprep.subr.mxu0 0.0
    %103 = vmatpush1.msra.mxu0 0.0
    %104 = vmatprep.subr.mxu0 0.0
    %105 = vmatpush1.msra.mxu0 0.0
    %106 = vmatprep.subr.mxu0 0.0
    %107 = vmatpush1.msra.mxu0 0.0
    %108 = vmatprep.subr.mxu0 0.0
    %109 = vmatpush1.msra.mxu0 0.0
    %110 = vmatprep.subr.mxu0 0.0
    %111 = vmatpush1.msra.mxu0 0.0
    %112 = vmatprep.subr.mxu0 0.0
    %113 = vmatpush1.msra.mxu0 0.0
    %114 = vmatprep.subr.mxu0 0.0
    %115 = vmatpush1.msra.mxu0 0.0
    %116 = vmatprep.subr.mxu0 0.0
    %117 = vmatpush1.msra.mxu0 0.0
    %118 = vmatprep.subr.mxu0 0.0
    %119 = vmatpush1.msra.mxu0 0.0
    %120 = vmatprep.subr.mxu0 0.0
    %121 = vmatpush1.msra.mxu0 0.0
    %122 = vmatprep.subr.mxu0 0.0
    %123 = vmatpush1.msra.mxu0 0.0
    %124 = vmatprep.subr.mxu0 0.0
    %125 = vmatpush1.msra.mxu0 0.0
    %126 = vmatprep.subr.mxu0 0.0
    %127 = vmatpush1.msra.mxu0 0.0
    %128 = vmatprep.subr.mxu0 0.0
    %129 = vmatpush1.msra.mxu0 0.0
    %130 = vmatprep.subr.mxu0 0.0
    %131 = vmatpush1.msra.mxu0 0.0
    %132 = vmatprep.subr.mxu0 0.0
    %133 = vmatpush1.msra.mxu0 0.0
    %134 = vmatprep.subr.mxu0 0.0
    %135 = vmatpush1.msra.mxu0 0.0
    %136 = vmatprep.subr.mxu0 0.0
    %137 = vmatpush1.msra.mxu0 0.0
    %138 = vmatprep.subr.mxu0 0.0
    %139 = vmatpush1.msra.mxu0 0.0
    %140 = vmatprep.subr.mxu0 0.0
    %141 = vmatpush1.msra.mxu0 0.0
    %142 = vmatprep.subr.mxu0 0.0
    %143 = vmatpush1.msra.mxu0 0.0
    %144 = vmatprep.subr.mxu0 0.0
    %145 = vmatpush1.msra.mxu0 0.0
    %146 = vmatprep.subr.mxu0 0.0
    %147 = vmatpush1.msra.mxu0 0.0
    %148 = vmatprep.mubr.f32.mxu0 0.0
    %149 = vmatmul.mubr.f32.gmra.mrb[0].mxu0 %v75
    %v150 = vpop.f32.mrb[0].mxu0
    %v151 = vadd.f32 %v66, %v150
    %v152 = vpop.f32.mrb[0].mxu0
    %v153 = vadd.f32 %v70, %v152
    %154 = vdwg.mxu0
    %v157 = vcombine.low %v151, %v153
    %v159 = vunpack.c.l.s4 1983009808
    %v160 = vunpack.c.0.s8 %v159
    %v161 = vlaneseq
    %v162 = vshrl.u32 %v161, 7
    %v163 = vsub.s32 %v160, %v162
    %v164 = vrot.slane %v157, %v163
    %166 = vst [vmem:[#allocation8] sm:$0xf] %v164
    // Predicated region
    $region26: #{tpu_custom_call.1} parent=1 // pred_check
      _
    $region27: #{tpu_custom_call.1} parent=1 // pred_check_branch
      %168 = sbr.rel (0) target = $region29
    $region28: #{tpu_custom_call.1} parent=1 // pred_region
      %s170 = ssub.s32 64, 64
      %171 = vsyncadd [#allocation4], %s170
      %s173 = sshll.u32 [#allocation8], 4
      %s174 = int_to_ptr.vmem [resolvable:$true] %s173
      %176 = dma.vmem_to_hbm [thread:$0]  %s174, 64, %s3, [#allocation4]
    $region29: #{tpu_custom_call.1} parent=1 // pred_fallthru
      _
    // Predicated region
    $region30: #{tpu_custom_call.1} parent=1 // pred_check
      _
    $region31: #{tpu_custom_call.1} parent=1 // pred_check_branch
      %178 = sbr.rel (0) target = $region33
    $region32: #{tpu_custom_call.1} parent=1 // pred_region
      %179 = dma.done [#allocation4], 64
    $region33: #{tpu_custom_call.1} parent=1 // pred_fallthru
      _
    %180 = vsyncpa [#allocation3], 1
    %181 = vsyncpa [#allocation6], 1
    %182 = vsyncpa [#allocation4], 1

</llo_original>
